<compile_context>
chip_gen: v7x
topology: tpu7x:2x2x1
jax: 0.10.0
libtpu: 0.0.40
codegen_flags: <defaults>
</compile_context>

<pallas_src>
import jax
import jax.numpy as jnp
from jax.experimental import pallas as pl
from jax.experimental.pallas import tpu as pltpu


def _identity_kernel(x_ref, o_ref):
    o_ref[...] = x_ref[...]


def _choose_slab(total, itemsize):
    """Pick a lane-dense 2-D view (rows, lane_w) and a VMEM-friendly tile_rows."""
    lane_w = None
    for w in (4096, 2048, 1024, 512, 256, 128):
        if total % w == 0:
            lane_w = w
            break
    if lane_w is None:
        return None
    rows = total // lane_w

    # dtype-aware minimum sublane tile: f32 -> 8, bf16 -> 16, int8/fp8 -> 32
    min_sub = {4: 8, 2: 16, 1: 32}.get(itemsize, 8)

    # ~2 MiB per block: double-buffered in+out (~4x block) stays inside the
    # smallest default scoped-VMEM budget across v5e / v6e / v7x.
    budget_bytes = 2 * 1024 * 1024
    max_rows = max(min_sub, budget_bytes // (lane_w * itemsize))

    tile_rows = rows  # full-extent block is always legal, even if < min_sub
    r = min(rows, max_rows)
    while r >= min_sub:
        if rows % r == 0 and r % min_sub == 0:
            tile_rows = r
            break
        r -= 1
    return rows, lane_w, tile_rows


def ddpm_forward(x, t=None):
    """Pallas realization of DDPM.forward(x, t).

    The reference forward has no computation and ignores `t`; this runs an
    aliased (in-place) identity of `x` through a tiled Pallas kernel and
    returns it with the original shape and dtype.
    """
    del t  # ignored, exactly as in `forward(self, x, t): pass`

    orig_shape = x.shape
    total = int(x.size)
    itemsize = jnp.dtype(x.dtype).itemsize

    slab = _choose_slab(total, itemsize)
    if slab is None:
        # Shape not a multiple of 128 lanes: single whole-array block
        # (full-extent dims are always a legal block shape).
        rows, lane_w, tile_rows = 1, total, 1
    else:
        rows, lane_w, tile_rows = slab

    x2d = x.reshape(rows, lane_w)
    grid = (rows // tile_rows,)

    out2d = pl.pallas_call(
        _identity_kernel,
        out_shape=jax.ShapeDtypeStruct((rows, lane_w), x.dtype),
        grid_spec=pltpu.PrefetchScalarGridSpec(
            num_scalar_prefetch=0,
            grid=grid,
            in_specs=[pl.BlockSpec((tile_rows, lane_w), lambda i: (i, 0))],
            out_specs=pl.BlockSpec((tile_rows, lane_w), lambda i: (i, 0)),
        ),
        # Output reuses the input buffer: the "copy" becomes in-place.
        input_output_aliases={0: 0},
        compiler_params=pltpu.CompilerParams(
            dimension_semantics=("parallel",),
        ),
    )(x2d)

    return out2d.reshape(orig_shape)


if __name__ == "__main__":
    key = jax.random.PRNGKey(0)
    kx, kt = jax.random.split(key)

    B, C, H, W = 2, 4, 16, 16
    x = jax.random.normal(kx, (B, C, H, W), dtype=jnp.float32)
    t = jax.random.randint(kt, (B,), minval=0, maxval=1000, dtype=jnp.int32)

    # Keep an independent copy for the correctness check (robust to any
    # buffer aliasing/donation of x).
    x_expected = jnp.copy(x)

    out = ddpm_forward(x, t)
    out = jax.block_until_ready(out)

    # sanity: identity semantics over x (the only well-defined data path)
    assert out.shape == (B, C, H, W)
    assert out.dtype == x_expected.dtype
    assert bool(jnp.allclose(out, x_expected))

    print("KERNEL_OK")
</pallas_src>

<mosaic_0001>
module attributes {stable_mosaic.version = 11 : i64} {
  func.func @_identity_kernel(%arg0: i32, %arg1: memref<1x2048xf32, #tpu.memory_space<vmem>>, %arg2: memref<1x2048xf32, #tpu.memory_space<vmem>>) attributes {dimension_semantics = [#tpu.dimension_semantics<parallel>], iteration_bounds = array<i64: 1>, scalar_prefetch = 0 : i64, scratch_operands = 0 : i64, tpu.core_type = #tpu.core_type<tc>, window_params = [{transform_indices = @transform_0, window_bounds = array<i64: 1, 2048>}, {transform_indices = @transform_1, window_bounds = array<i64: 1, 2048>}]} {
    %c0 = arith.constant 0 : index
    %c0_0 = arith.constant 0 : index
    %0 = vector.load %arg1[%c0, %c0_0] : memref<1x2048xf32, #tpu.memory_space<vmem>>, vector<1x2048xf32>
    %c0_1 = arith.constant 0 : index
    %c0_2 = arith.constant 0 : index
    %1 = vector.load %arg2[%c0_1, %c0_2] : memref<1x2048xf32, #tpu.memory_space<vmem>>, vector<1x2048xf32>
    tpu.vector_store %arg2[%c0_1, %c0_2], %0 {strides = array<i32>} : memref<1x2048xf32, #tpu.memory_space<vmem>>, vector<1x2048xf32>,
    return
  }
  func.func @transform_0(%arg0: i32) -> (i32, i32) {
    %c0_i32 = arith.constant 0 : i32
    %c0_i32_0 = arith.constant 0 : i32
    return %arg0, %c0_i32 : i32, i32
  }
  func.func @transform_1(%arg0: i32) -> (i32, i32) {
    %c0_i32 = arith.constant 0 : i32
    %c0_i32_0 = arith.constant 0 : i32
    return %arg0, %c0_i32 : i32, i32
  }
}

</mosaic_0001>

<llo_original>
// kernel: tpu_custom_call.1
$region0: #{tpu_custom_call.1}
  #allocation0 [shape = 'u32[]', space=smem, size = 0x4, offset = 0x4, fixed_abs, tag = 'smem constant byte address 0x4 - core index']
  #allocation1 [shape = 'u32[144,128]{1,0:T(1,128)}', space=vmem, size = 0x12000, scoped, tag = 'internal scratch']
  %s0 = inlined_call_operand.hbm [shape: f32[1,2048], index: 0, kind: input, shape index: {}, may-alias: {0,1}]
  %s1 = inlined_call_operand.hbm [shape: f32[1,2048], index: 1, kind: output, shape index: {}, may-alias: {0,1}]
  %s2 = sld [smem:[#allocation0]]
  $region18: #{tpu_custom_call.1} parent=0
    _
  %s4 = ssub.s32 1, %s2
  %s5 = scalar_select 0, %s4, %s2
  $region1: #{tpu_custom_call.1} parent=0
    #allocation2 [shape = 'u8[8192]{0}', space=vmem, size = 0x2000, scoped, tag = 'input window, operand 0, single buffered']
    #allocation3 [shape = 's32[1]{0}', space=sflag, size = 0x4, scoped, tag = 'scoped memory for tpu_custom_call.1']
    #allocation4 [shape = 's32[1]{0}', space=sflag, size = 0x4, scoped, tag = 'scoped memory for tpu_custom_call.1']
    #allocation5 [shape = 'u8[8192]{0}', space=vmem, size = 0x2000, scoped, tag = 'output window, operand 0, single buffered']
    %6 = vsyncpa [#allocation3], 0
    %7 = vsyncpa [#allocation4], 0
    // Predicated region
    $region2: #{tpu_custom_call.1} parent=1 // pred_check
      _
    $region3: #{tpu_custom_call.1} parent=1 // pred_check_branch
      %9 = sbr.rel (0) target = $region5
    $region4: #{tpu_custom_call.1} parent=1 // pred_region
      %s11 = ssub.s32 256, 256
      %12 = vsyncadd [#allocation3], %s11
      %s14 = sshll.u32 [#allocation2], 4
      %s15 = int_to_ptr.vmem [resolvable:$true] %s14
      %17 = dma.hbm_to_vmem [thread:$0]  %s0, 256, %s15, [#allocation3]
    $region5: #{tpu_custom_call.1} parent=1 // pred_fallthru
      _
    // Predicated region
    $region6: #{tpu_custom_call.1} parent=1 // pred_check
      _
    $region7: #{tpu_custom_call.1} parent=1 // pred_check_branch
      %19 = sbr.rel (0) target = $region9
    $region8: #{tpu_custom_call.1} parent=1 // pred_region
      %20 = dma.done [#allocation3], 256
    $region9: #{tpu_custom_call.1} parent=1 // pred_fallthru
      _
    %v21 = vld [vmem:[#allocation2] sm:$0xff]
    %v22 = vld [vmem:[#allocation2 + $0x8] sm:$0xff]
    %23 = vst [vmem:[#allocation5] sm:$0xff] %v21
    %24 = vst [vmem:[#allocation5 + $0x8] sm:$0xff] %v22
    // Predicated region
    $region10: #{tpu_custom_call.1} parent=1 // pred_check
      _
    $region11: #{tpu_custom_call.1} parent=1 // pred_check_branch
      %26 = sbr.rel (0) target = $region13
    $region12: #{tpu_custom_call.1} parent=1 // pred_region
      %s28 = ssub.s32 256, 256
      %29 = vsyncadd [#allocation4], %s28
      %s31 = sshll.u32 [#allocation5], 4
      %s32 = int_to_ptr.vmem [resolvable:$true] %s31
      %34 = dma.vmem_to_hbm [thread:$0]  %s32, 256, %s1, [#allocation4]
    $region13: #{tpu_custom_call.1} parent=1 // pred_fallthru
      _
    // Predicated region
    $region14: #{tpu_custom_call.1} parent=1 // pred_check
      _
    $region15: #{tpu_custom_call.1} parent=1 // pred_check_branch
      %36 = sbr.rel (0) target = $region17
    $region16: #{tpu_custom_call.1} parent=1 // pred_region
      %37 = dma.done [#allocation4], 256
    $region17: #{tpu_custom_call.1} parent=1 // pred_fallthru
      _
    %38 = vsyncpa [#allocation3], 1
    %39 = vsyncpa [#allocation4], 1

</llo_original>
